<compile_context>
chip_gen: v6e
topology: v6e:2x2x1
jax: 0.10.0
libtpu: 0.0.40
codegen_flags: <defaults>
</compile_context>

<pallas_src>
import jax
import jax.numpy as jnp
from jax.experimental import pallas as pl
from jax.experimental.pallas import tpu as pltpu


def _round_up(a, b):
    return (a + b - 1) // b * b


def _choose_tk(K, *, max_tk=2048):
    """Contraction tile. Full K when small; otherwise the largest 128-aligned
    divisor of K <= max_tk so the ragged tail never pollutes the reduction.
    Falls back to full K (resident weight) if no clean divisor exists."""
    if K <= max_tk:
        return K
    for tk in range(max_tk - max_tk % 128, 0, -128):
        if K % tk == 0:
            return tk
    return K


def _choose_tm(M, TK, *, x_vmem_budget=8 << 20, min_steps=8):
    """Row tile. Fits double-buffered (TM, TK) f32 x tiles into a conservative
    VMEM budget, rounded to the f32 sublane multiple of 8, and capped so the
    grid has >= min_steps steps whenever M allows (keeps the DMA pipeline and
    the v7x megacore split busy). Tiny M falls back to a full-dim block."""
    if M < 8:
        return M                              # full-dim block (divisibility exemption)
    tm = max(8, (x_vmem_budget // (2 * 4 * max(TK, 1))) // 8 * 8)
    tm = min(tm, 1024)
    tm = min(tm, max(8, _round_up(pl.cdiv(M, min_steps), 8)))
    return min(tm, _round_up(M, 8))


def _encoder_kernel(x_ref, wfc_ref, bfc_ref, wh_ref, bh_ref, out_ref, acc_ref):
    # x_ref:   (TM, TK)  f32  streamed row/contraction tile of flattened input
    # wfc_ref: (TK, H)   bf16 fc weight tile (already transposed to (in, out))
    # bfc_ref: (1, H)    f32  fc bias
    # wh_ref:  (H, 2O)   bf16 fused [z_mean | z_log_var] weight
    # bh_ref:  (1, 2O)   f32  fused bias
    # out_ref: (TM, 2O)  f32  fused output tile
    # acc_ref: (TM, H)   f32  VMEM accumulator across the K grid axis
    k = pl.program_id(1)

    @pl.when(k == 0)
    def _():
        acc_ref[...] = jnp.zeros_like(acc_ref)

    # In-kernel f32 -> bf16 cast of x (free VPU slot under the HBM roofline;
    # avoids an extra XLA cast pass over the whole input in HBM).
    acc_ref[...] += jnp.dot(x_ref[...].astype(jnp.bfloat16), wfc_ref[...],
                            preferred_element_type=jnp.float32)

    @pl.when(k == pl.num_programs(1) - 1)
    def _():
        h = jnp.tanh(acc_ref[...] + bfc_ref[...])            # f32 bias + tanh
        z = jnp.dot(h.astype(jnp.bfloat16), wh_ref[...],
                    preferred_element_type=jnp.float32) + bh_ref[...]
        out_ref[...] = z.astype(out_ref.dtype)


def prepare_params(params):
    """One-time weight prep (hoisted out of the per-call path): fuse the two
    heads into a single (H, 2*O) matmul and pre-cast matmul weights to bf16.
    Biases stay f32 for the f32 epilogue."""
    wfc, bfc, wm, bm, wv, bv = params       # (K,H) (1,H) (H,O) (1,O) (H,O) (1,O)
    wh = jnp.concatenate([wm, wv], axis=1)  # (H, 2O) fused [z_mean | z_log_var]
    bh = jnp.concatenate([bm, bv], axis=1)  # (1, 2O)
    return (wfc.astype(jnp.bfloat16), bfc.astype(jnp.float32),
            wh.astype(jnp.bfloat16), bh.astype(jnp.float32))


@jax.jit
def encoder_forward(x, prepped):
    """x: (B, T, C, H, W) float32.  Returns (z_mean, z_log_var): (B, T, O)."""
    wfc_bf, bfc, wh_bf, bh = prepped
    B, T = x.shape[0], x.shape[1]
    K = 1
    for d in x.shape[2:]:
        K *= d
    M = B * T
    x2d = x.reshape(M, K)                   # f32; no cast, no pad in the wrapper

    H = wfc_bf.shape[1]
    O2 = wh_bf.shape[1]
    O = O2 // 2

    TK = _choose_tk(K)
    TM = _choose_tm(M, TK)
    grid = (pl.cdiv(M, TM), K // TK)        # reduction axis last

    cost = pl.CostEstimate(
        flops=2 * M * K * H + 2 * M * H * O2,
        transcendentals=M * H,
        bytes_accessed=(M * K * 4           # x read (f32, cast in-kernel)
                        + K * H * 2         # fc weight (bf16)
                        + H * 4             # fc bias (f32)
                        + H * O2 * 2        # fused head weight (bf16)
                        + O2 * 4            # fused head bias (f32)
                        + M * O2 * 4),      # fused output (f32)
    )

    # TODO(synk): lane-dense writeback (in-kernel repack (TM, 2O) -> (TM/8, 128))
    # deferred until the Mosaic relayout cost is verified in a bundle dump;
    # output bytes are <7% of the streamed x traffic at these shapes.
    # TODO(synk): optional fp8 x/wfc path for the first matmul on v7x
    # (needs accuracy sign-off for z_log_var consumers).
    out = pl.pallas_call(
        _encoder_kernel,
        out_shape=jax.ShapeDtypeStruct((M, O2), jnp.float32),
        grid=grid,
        in_specs=[
            pl.BlockSpec((TM, TK), lambda i, k: (i, k)),   # streamed x tiles (f32)
            pl.BlockSpec((TK, H), lambda i, k: (k, 0)),    # fc weight tiles (bf16)
            pl.BlockSpec((1, H), lambda i, k: (0, 0)),     # fc bias (f32)
            pl.BlockSpec((H, O2), lambda i, k: (0, 0)),    # fused head weight (bf16)
            pl.BlockSpec((1, O2), lambda i, k: (0, 0)),    # fused head bias (f32)
        ],
        out_specs=pl.BlockSpec((TM, O2), lambda i, k: (i, 0)),
        scratch_shapes=[pltpu.VMEM((TM, H), jnp.float32)],
        compiler_params=pltpu.CompilerParams(
            dimension_semantics=("parallel", "arbitrary"),  # megacore split on M
        ),
        cost_estimate=cost,
    )(x2d, wfc_bf, bfc, wh_bf, bh)

    z_mean = out[:, :O].reshape(B, T, O)
    z_log_var = out[:, O:].reshape(B, T, O)
    return z_mean, z_log_var


def init_params(key, in_features, hidden, out_features):
    """Deterministic init mimicking nn.Linear's U(-1/sqrt(fan_in), 1/sqrt(fan_in)).
    Weights returned already transposed to (in, out); biases as (1, out)."""
    k1, k2, k3, k4, k5, k6 = jax.random.split(key, 6)
    b_fc = 1.0 / jnp.sqrt(in_features)
    b_hd = 1.0 / jnp.sqrt(hidden)
    wfc = jax.random.uniform(k1, (in_features, hidden), jnp.float32, -b_fc, b_fc)
    bfc = jax.random.uniform(k2, (1, hidden), jnp.float32, -b_fc, b_fc)
    wm = jax.random.uniform(k3, (hidden, out_features), jnp.float32, -b_hd, b_hd)
    bm = jax.random.uniform(k4, (1, out_features), jnp.float32, -b_hd, b_hd)
    wv = jax.random.uniform(k5, (hidden, out_features), jnp.float32, -b_hd, b_hd)
    bv = jax.random.uniform(k6, (1, out_features), jnp.float32, -b_hd, b_hd)
    return wfc, bfc, wm, bm, wv, bv


if __name__ == "__main__":
    # Encoder(in_shape=(T, C, H, W)=(4, 4, 8, 8), out_channels=8)
    # forward input x: (B,) + in_shape = (2, 4, 4, 8, 8);  K = C*H*W = 256
    B, T, C, Hs, Ws = 2, 4, 4, 8, 8
    HIDDEN = 64   # "intermidiate_channels" in the PyTorch module
    OUT = 8       # out_channels

    key = jax.random.PRNGKey(0)
    kx, kp = jax.random.split(key)
    x = jax.random.normal(kx, (B, T, C, Hs, Ws), dtype=jnp.float32)
    params = init_params(kp, C * Hs * Ws, HIDDEN, OUT)
    prepped = prepare_params(params)          # one-time weight prep (hoisted)

    z_mean, z_log_var = encoder_forward(x, prepped)
    jax.block_until_ready((z_mean, z_log_var))
    assert z_mean.shape == (B, T, OUT) and z_log_var.shape == (B, T, OUT)

    # --- Reference 1: pure-JAX with the SAME bf16-matmul / f32-accum strategy.
    wfc, bfc, wm, bm, wv, bv = params
    x2d = x.reshape(B * T, -1)
    h_ref = jnp.tanh(
        jnp.dot(x2d.astype(jnp.bfloat16), wfc.astype(jnp.bfloat16),
                preferred_element_type=jnp.float32) + bfc)
    h_bf = h_ref.astype(jnp.bfloat16)
    zm_ref = (jnp.dot(h_bf, wm.astype(jnp.bfloat16),
                      preferred_element_type=jnp.float32) + bm).reshape(B, T, OUT)
    zv_ref = (jnp.dot(h_bf, wv.astype(jnp.bfloat16),
                      preferred_element_type=jnp.float32) + bv).reshape(B, T, OUT)
    assert jnp.allclose(z_mean, zm_ref, atol=1e-4, rtol=1e-4)
    assert jnp.allclose(z_log_var, zv_ref, atol=1e-4, rtol=1e-4)

    # --- Reference 2: pure-f32 math, loose tolerance (bf16 matmul rounding).
    h32 = jnp.tanh(x2d @ wfc + bfc)
    zm32 = (h32 @ wm + bm).reshape(B, T, OUT)
    zv32 = (h32 @ wv + bv).reshape(B, T, OUT)
    assert jnp.allclose(z_mean, zm32, atol=5e-2, rtol=5e-2)
    assert jnp.allclose(z_log_var, zv32, atol=5e-2, rtol=5e-2)

    print("KERNEL_OK")
</pallas_src>

<mosaic_0001>
module attributes {stable_mosaic.version = 11 : i64} {
  func.func @_encoder_kernel(%arg0: i32, %arg1: i32, %arg2: memref<8x256xf32, #tpu.memory_space<vmem>>, %arg3: memref<256x64xbf16, #tpu.memory_space<vmem>>, %arg4: memref<1x64xf32, #tpu.memory_space<vmem>>, %arg5: memref<64x16xbf16, #tpu.memory_space<vmem>>, %arg6: memref<1x16xf32, #tpu.memory_space<vmem>>, %arg7: memref<8x16xf32, #tpu.memory_space<vmem>>, %arg8: memref<8x64xf32, #tpu.memory_space<vmem>>) attributes {dimension_semantics = [#tpu.dimension_semantics<parallel>, #tpu.dimension_semantics<arbitrary>], iteration_bounds = array<i64: 1, 1>, scalar_prefetch = 0 : i64, scratch_operands = 1 : i64, tpu.core_type = #tpu.core_type<tc>, window_params = [{transform_indices = @transform_0, window_bounds = array<i64: 8, 256>}, {transform_indices = @transform_1, window_bounds = array<i64: 256, 64>}, {pipeline_mode = #tpu.pipeline_mode<synchronous>, transform_indices = @transform_2, window_bounds = array<i64: 1, 64>}, {pipeline_mode = #tpu.pipeline_mode<synchronous>, transform_indices = @transform_3, window_bounds = array<i64: 64, 16>}, {pipeline_mode = #tpu.pipeline_mode<synchronous>, transform_indices = @transform_4, window_bounds = array<i64: 1, 16>}, {transform_indices = @transform_5, window_bounds = array<i64: 8, 16>}]} {
    %c0_i32 = arith.constant 0 : i32
    %0 = arith.cmpi eq, %arg1, %c0_i32 : i32
    %1 = arith.extui %0 : i1 to i32
    %c0_i32_0 = arith.constant 0 : i32
    %2 = arith.cmpi ne, %1, %c0_i32_0 : i32
    scf.if %2 {
      %cst_10 = arith.constant 0.000000e+00 : f32
      %13 = vector.broadcast %cst_10 : f32 to vector<8x64xf32>
      %c0_11 = arith.constant 0 : index
      %c0_12 = arith.constant 0 : index
      %14 = vector.load %arg8[%c0_11, %c0_12] : memref<8x64xf32, #tpu.memory_space<vmem>>, vector<8x64xf32>
      tpu.vector_store %arg8[%c0_11, %c0_12], %13 {strides = array<i32>} : memref<8x64xf32, #tpu.memory_space<vmem>>, vector<8x64xf32>,
    } else {
    }
    %c0 = arith.constant 0 : index
    %c0_1 = arith.constant 0 : index
    %3 = vector.load %arg8[%c0, %c0_1] : memref<8x64xf32, #tpu.memory_space<vmem>>, vector<8x64xf32>
    %c0_2 = arith.constant 0 : index
    %c0_3 = arith.constant 0 : index
    %4 = vector.load %arg2[%c0_2, %c0_3] : memref<8x256xf32, #tpu.memory_space<vmem>>, vector<8x256xf32>
    %5 = arith.truncf %4 : vector<8x256xf32> to vector<8x256xbf16>
    %c0_4 = arith.constant 0 : index
    %c0_5 = arith.constant 0 : index
    %6 = vector.load %arg3[%c0_4, %c0_5] : memref<256x64xbf16, #tpu.memory_space<vmem>>, vector<256x64xbf16>
    %cst = arith.constant dense<0.000000e+00> : vector<8x64xf32>
    %7 = tpu.matmul %5, %6, %cst {dimension_numbers = #tpu.dot_dimension_numbers<[1], [0], [0], [1], [0, 0, 1, 1], [], []>} : vector<8x256xbf16>, vector<256x64xbf16>, vector<8x64xf32> -> vector<8x64xf32>
    %8 = arith.addf %3, %7 : vector<8x64xf32>
    %c0_6 = arith.constant 0 : index
    %c0_7 = arith.constant 0 : index
    %9 = vector.load %arg8[%c0_6, %c0_7] : memref<8x64xf32, #tpu.memory_space<vmem>>, vector<8x64xf32>
    tpu.vector_store %arg8[%c0_6, %c0_7], %8 {strides = array<i32>} : memref<8x64xf32, #tpu.memory_space<vmem>>, vector<8x64xf32>,
    %c0_i32_8 = arith.constant 0 : i32
    %10 = arith.cmpi eq, %arg1, %c0_i32_8 : i32
    %11 = arith.extui %10 : i1 to i32
    %c0_i32_9 = arith.constant 0 : i32
    %12 = arith.cmpi ne, %11, %c0_i32_9 : i32
    scf.if %12 {
      %c0_10 = arith.constant 0 : index
      %c0_11 = arith.constant 0 : index
      %13 = vector.load %arg8[%c0_10, %c0_11] : memref<8x64xf32, #tpu.memory_space<vmem>>, vector<8x64xf32>
      %c0_12 = arith.constant 0 : index
      %c0_13 = arith.constant 0 : index
      %14 = vector.load %arg4[%c0_12, %c0_13] : memref<1x64xf32, #tpu.memory_space<vmem>>, vector<1x64xf32>
      %15 = vector.broadcast %14 : vector<1x64xf32> to vector<8x64xf32>
      %16 = arith.addf %13, %15 : vector<8x64xf32>
      %17 = math.tanh %16 : vector<8x64xf32>
      %18 = arith.truncf %17 : vector<8x64xf32> to vector<8x64xbf16>
      %c0_14 = arith.constant 0 : index
      %c0_15 = arith.constant 0 : index
      %19 = vector.load %arg5[%c0_14, %c0_15] : memref<64x16xbf16, #tpu.memory_space<vmem>>, vector<64x16xbf16>
      %cst_16 = arith.constant dense<0.000000e+00> : vector<8x16xf32>
      %20 = tpu.matmul %18, %19, %cst_16 {dimension_numbers = #tpu.dot_dimension_numbers<[1], [0], [0], [1], [0, 0, 1, 1], [], []>} : vector<8x64xbf16>, vector<64x16xbf16>, vector<8x16xf32> -> vector<8x16xf32>
      %c0_17 = arith.constant 0 : index
      %c0_18 = arith.constant 0 : index
      %21 = vector.load %arg6[%c0_17, %c0_18] : memref<1x16xf32, #tpu.memory_space<vmem>>, vector<1x16xf32>
      %22 = vector.broadcast %21 : vector<1x16xf32> to vector<8x16xf32>
      %23 = arith.addf %20, %22 : vector<8x16xf32>
      %c0_19 = arith.constant 0 : index
      %c0_20 = arith.constant 0 : index
      %24 = vector.load %arg7[%c0_19, %c0_20] : memref<8x16xf32, #tpu.memory_space<vmem>>, vector<8x16xf32>
      tpu.vector_store %arg7[%c0_19, %c0_20], %23 {strides = array<i32>} : memref<8x16xf32, #tpu.memory_space<vmem>>, vector<8x16xf32>,
    } else {
    }
    return
  }
  func.func @transform_0(%arg0: i32, %arg1: i32) -> (i32, i32) {
    %c0_i32 = arith.constant 0 : i32
    return %arg0, %arg1 : i32, i32
  }
  func.func @transform_1(%arg0: i32, %arg1: i32) -> (i32, i32) {
    %c0_i32 = arith.constant 0 : i32
    %c0_i32_0 = arith.constant 0 : i32
    return %arg1, %c0_i32 : i32, i32
  }
  func.func @transform_2(%arg0: i32, %arg1: i32) -> (i32, i32) {
    %c0_i32 = arith.constant 0 : i32
    %c0_i32_0 = arith.constant 0 : i32
    %c0_i32_1 = arith.constant 0 : i32
    return %c0_i32, %c0_i32_0 : i32, i32
  }
  func.func @transform_3(%arg0: i32, %arg1: i32) -> (i32, i32) {
    %c0_i32 = arith.constant 0 : i32
    %c0_i32_0 = arith.constant 0 : i32
    %c0_i32_1 = arith.constant 0 : i32
    return %c0_i32, %c0_i32_0 : i32, i32
  }
  func.func @transform_4(%arg0: i32, %arg1: i32) -> (i32, i32) {
    %c0_i32 = arith.constant 0 : i32
    %c0_i32_0 = arith.constant 0 : i32
    %c0_i32_1 = arith.constant 0 : i32
    return %c0_i32, %c0_i32_0 : i32, i32
  }
  func.func @transform_5(%arg0: i32, %arg1: i32) -> (i32, i32) {
    %c0_i32 = arith.constant 0 : i32
    %c0_i32_0 = arith.constant 0 : i32
    return %arg0, %c0_i32 : i32, i32
  }
}

</mosaic_0001>

<llo_original>
// kernel: encoder_forward.1
$region0: #{encoder_forward.1}
  #allocation0 [shape = 'u32[]', space=smem, size = 0x4, offset = 0x4, fixed_abs, tag = 'smem constant byte address 0x4 - core index']
  #allocation1 [shape = 'u32[144,128]{1,0:T(1,128)}', space=vmem, size = 0x12000, scoped, tag = 'internal scratch']
  #allocation2 [shape = 'f32[8,64]{1,0:T(8,128)}', space=vmem, size = 0x1000, scoped, tag = 'scratch operand']
  %s0 = inlined_call_operand.vmem [shape: f32[8,256], index: 0, kind: input, shape index: {}]
  %s1 = inlined_call_operand.vmem [shape: bf16[256,64], index: 1, kind: input, shape index: {}]
  %s2 = inlined_call_operand.vmem [shape: f32[1,64], index: 2, kind: input, shape index: {}]
  %s3 = inlined_call_operand.vmem [shape: bf16[64,16], index: 3, kind: input, shape index: {}]
  %s4 = inlined_call_operand.vmem [shape: f32[1,16], index: 4, kind: input, shape index: {}]
  %s5 = inlined_call_operand.vmem [shape: f32[8,16], index: 5, kind: output, shape index: {}]
  %s6 = sld [smem:[#allocation0]]
  $region38: #{encoder_forward.1} parent=0
    _
  %s8 = ssub.s32 1, %s6
  %s9 = scalar_select 0, %s8, %s6
  // Predicated region
  $region2: #{encoder_forward.1} parent=0 // pred_check
    _
  $region3: #{encoder_forward.1} parent=0 // pred_check_branch
    %11 = sbr.rel (0) target = $region5
  $region4: #{encoder_forward.1} parent=0 // pred_region
    _
  $region5: #{encoder_forward.1} parent=0 // pred_fallthru
    _
  // Predicated region
  $region6: #{encoder_forward.1} parent=0 // pred_check
    _
  $region7: #{encoder_forward.1} parent=0 // pred_check_branch
    %13 = sbr.rel (0) target = $region9
  $region8: #{encoder_forward.1} parent=0 // pred_region
    _
  $region9: #{encoder_forward.1} parent=0 // pred_fallthru
    _
  // Predicated region
  $region10: #{encoder_forward.1} parent=0 // pred_check
    _
  $region11: #{encoder_forward.1} parent=0 // pred_check_branch
    %15 = sbr.rel (0) target = $region13
  $region12: #{encoder_forward.1} parent=0 // pred_region
    _
  $region13: #{encoder_forward.1} parent=0 // pred_fallthru
    _
  // Predicated region
  $region14: #{encoder_forward.1} parent=0 // pred_check
    _
  $region15: #{encoder_forward.1} parent=0 // pred_check_branch
    %17 = sbr.rel (0) target = $region17
  $region16: #{encoder_forward.1} parent=0 // pred_region
    _
  $region17: #{encoder_forward.1} parent=0 // pred_fallthru
    _
  // Predicated region
  $region18: #{encoder_forward.1} parent=0 // pred_check
    _
  $region19: #{encoder_forward.1} parent=0 // pred_check_branch
    %19 = sbr.rel (0) target = $region21
  $region20: #{encoder_forward.1} parent=0 // pred_region
    _
  $region21: #{encoder_forward.1} parent=0 // pred_fallthru
    _
  %p21 = scmp.eq.s32.totalorder 0, 0
  // Predicated region
  $region22: #{encoder_forward.1} parent=0 // pred_check
    %p22 = pneg %p21
  $region23: #{encoder_forward.1} parent=0 // pred_check_branch
    %24 = sbr.rel (%p22) target = $region25
  $region24: #{encoder_forward.1} parent=0 // pred_region
    %vm25 = vcmask 523264
    %26 = vst.msk [vmem:[#allocation2] sm:$0xff] %vm25, 0.0
  $region25: #{encoder_forward.1} parent=0 // pred_fallthru
    _
  %v27 = vld [vmem:[#allocation2] sm:$0xff]
  %v28 = vld [vmem:[%s0] sm:$0xff]
  %v29 = vld [vmem:[%s0 + $0x8] sm:$0xff]
  %v30 = vpack.c.bf16 %v28, %v28
  %v31 = vpack.c.bf16 %v29, %v29
  %v32 = vld [vmem:[%s1] sm:$0xf]
  %v33 = vld [vmem:[%s1 + $0x4] sm:$0xf]
  %v34 = vld [vmem:[%s1 + $0x8] sm:$0xf]
  %v35 = vld [vmem:[%s1 + $0xc] sm:$0xf]
  %v36 = vld [vmem:[%s1 + $0x10] sm:$0xf]
  %v37 = vld [vmem:[%s1 + $0x14] sm:$0xf]
  %v38 = vld [vmem:[%s1 + $0x18] sm:$0xf]
  %v39 = vld [vmem:[%s1 + $0x1c] sm:$0xf]
  %v40 = vld [vmem:[%s1 + $0x20] sm:$0xf]
  %v41 = vld [vmem:[%s1 + $0x24] sm:$0xf]
  %v42 = vld [vmem:[%s1 + $0x28] sm:$0xf]
  %v43 = vld [vmem:[%s1 + $0x2c] sm:$0xf]
  %v44 = vld [vmem:[%s1 + $0x30] sm:$0xf]
  %v45 = vld [vmem:[%s1 + $0x34] sm:$0xf]
  %v46 = vld [vmem:[%s1 + $0x38] sm:$0xf]
  %v47 = vld [vmem:[%s1 + $0x3c] sm:$0xf]
  %v48 = vld [vmem:[%s1 + $0x40] sm:$0xf]
  %v49 = vld [vmem:[%s1 + $0x44] sm:$0xf]
  %v50 = vld [vmem:[%s1 + $0x48] sm:$0xf]
  %v51 = vld [vmem:[%s1 + $0x4c] sm:$0xf]
  %v52 = vld [vmem:[%s1 + $0x50] sm:$0xf]
  %v53 = vld [vmem:[%s1 + $0x54] sm:$0xf]
  %v54 = vld [vmem:[%s1 + $0x58] sm:$0xf]
  %v55 = vld [vmem:[%s1 + $0x5c] sm:$0xf]
  %v56 = vld [vmem:[%s1 + $0x60] sm:$0xf]
  %v57 = vld [vmem:[%s1 + $0x64] sm:$0xf]
  %v58 = vld [vmem:[%s1 + $0x68] sm:$0xf]
  %v59 = vld [vmem:[%s1 + $0x6c] sm:$0xf]
  %v60 = vld [vmem:[%s1 + $0x70] sm:$0xf]
  %v61 = vld [vmem:[%s1 + $0x74] sm:$0xf]
  %v62 = vld [vmem:[%s1 + $0x78] sm:$0xf]
  %v63 = vld [vmem:[%s1 + $0x7c] sm:$0xf]
  %v96 = vunpack.c.l.b16 %v32
  %v97 = vunpack.c.l.b16 %v33
  %v98 = vunpack.c.l.b16 %v34
  %v99 = vunpack.c.l.b16 %v35
  %v100 = vunpack.c.l.b16 %v36
  %v101 = vunpack.c.l.b16 %v37
  %v102 = vunpack.c.l.b16 %v38
  %v103 = vunpack.c.l.b16 %v39
  %v104 = vunpack.c.l.b16 %v40
  %v105 = vunpack.c.l.b16 %v41
  %v106 = vunpack.c.l.b16 %v42
  %v107 = vunpack.c.l.b16 %v43
  %v108 = vunpack.c.l.b16 %v44
  %v109 = vunpack.c.l.b16 %v45
  %v110 = vunpack.c.l.b16 %v46
  %v111 = vunpack.c.l.b16 %v47
  %v112 = vunpack.c.l.b16 %v48
  %v113 = vunpack.c.l.b16 %v49
  %v114 = vunpack.c.l.b16 %v50
  %v115 = vunpack.c.l.b16 %v51
  %v116 = vunpack.c.l.b16 %v52
  %v117 = vunpack.c.l.b16 %v53
  %v118 = vunpack.c.l.b16 %v54
  %v119 = vunpack.c.l.b16 %v55
  %v120 = vunpack.c.l.b16 %v56
  %v121 = vunpack.c.l.b16 %v57
  %v122 = vunpack.c.l.b16 %v58
  %v123 = vunpack.c.l.b16 %v59
  %v124 = vunpack.c.l.b16 %v60
  %v125 = vunpack.c.l.b16 %v61
  %v126 = vunpack.c.l.b16 %v62
  %v127 = vunpack.c.l.b16 %v63
  %v128 = vpack.c.b16 %v97, %v96
  %v129 = vpack.c.b16 %v99, %v98
  %v130 = vpack.c.b16 %v101, %v100
  %v131 = vpack.c.b16 %v103, %v102
  %v132 = vpack.c.b16 %v105, %v104
  %v133 = vpack.c.b16 %v107, %v106
  %v134 = vpack.c.b16 %v109, %v108
  %v135 = vpack.c.b16 %v111, %v110
  %v136 = vpack.c.b16 %v113, %v112
  %v137 = vpack.c.b16 %v115, %v114
  %v138 = vpack.c.b16 %v117, %v116
  %v139 = vpack.c.b16 %v119, %v118
  %v140 = vpack.c.b16 %v121, %v120
  %v141 = vpack.c.b16 %v123, %v122
  %v142 = vpack.c.b16 %v125, %v124
  %v143 = vpack.c.b16 %v127, %v126
  %160 = vmatprep.subr.bf16.mxu0 0
  %161 = vmatpush1.bf16.msra.mxu0 %v135
  %162 = vmatprep.subr.bf16.mxu0 0
  %163 = vmatpush1.bf16.msra.mxu0 %v134
  %164 = vmatprep.subr.bf16.mxu0 0
  %165 = vmatpush1.bf16.msra.mxu0 %v133
  %166 = vmatprep.subr.bf16.mxu0 0
  %167 = vmatpush1.bf16.msra.mxu0 %v132
  %168 = vmatprep.subr.bf16.mxu0 0
  %169 = vmatpush1.bf16.msra.mxu0 %v131
  %170 = vmatprep.subr.bf16.mxu0 0
  %171 = vmatpush1.bf16.msra.mxu0 %v130
  %172 = vmatprep.subr.bf16.mxu0 0
  %173 = vmatpush1.bf16.msra.mxu0 %v129
  %174 = vmatprep.subr.bf16.mxu0 0
  %175 = vmatpush1.bf16.msra.mxu0 %v128
  %176 = vmatprep.subr.bf16.mxu0 0
  %177 = vmatpush2.bf16.msra.mxu0 %v143
  %178 = vmatprep.subr.bf16.mxu0 0
  %179 = vmatpush2.bf16.msra.mxu0 %v142
  %180 = vmatprep.subr.bf16.mxu0 0
  %181 = vmatpush2.bf16.msra.mxu0 %v141
  %182 = vmatprep.subr.bf16.mxu0 0
  %183 = vmatpush2.bf16.msra.mxu0 %v140
  %184 = vmatprep.subr.bf16.mxu0 0
  %185 = vmatpush2.bf16.msra.mxu0 %v139
  %186 = vmatprep.subr.bf16.mxu0 0
  %187 = vmatpush2.bf16.msra.mxu0 %v138
  %188 = vmatprep.subr.bf16.mxu0 0
  %189 = vmatpush2.bf16.msra.mxu0 %v137
  %190 = vmatprep.subr.bf16.mxu0 0
  %191 = vmatpush2.bf16.msra.mxu0 %v136
  %192 = vmatprep.mubr.bf16.mxu0 %v31
  %193 = vmatmul.mubr.bf16.gmra.mxu0 %v30
  %v194 = vpop.f32.mrf.mxu0
  %v195 = vadd.f32 0.0, %v194
  %v196 = vpop.f32.mrf.mxu0
  %v197 = vpop.f32.mrf.mxu0
  %v198 = vpop.f32.mrf.mxu0
  %199 = vdwg.mxu0
  %v200 = vadd.f32 %v27, %v195
  %vm201 = vcmask 523264
  %202 = vst.msk [vmem:[#allocation2] sm:$0xff] %vm201, %v200
  // Predicated region
  $region26: #{encoder_forward.1} parent=0 // pred_check
    %p203 = pneg %p21
  $region27: #{encoder_forward.1} parent=0 // pred_check_branch
    %205 = sbr.rel (%p203) target = $region29
  $region28: #{encoder_forward.1} parent=0 // pred_region
    %v206 = vld [vmem:[#allocation2] sm:$0xff]
    %v207 = vld [vmem:[%s2] sm:$0x1]
    %v209 = vlaneseq
    %v210 = vshrl.u32 %v209, 7
    %v211 = vsub.s32 0, %v210
    %v212 = vrot.slane %v207, %v211
    %v214 = vadd.f32 %v206, %v212
    %v215 = vtanh.pop %v214
    %v216 = vpack.c.bf16 %v215, %v215
    %v217 = vld [vmem:[%s3] sm:$0xf]
    %v218 = vld [vmem:[%s3 + $0x4] sm:$0xf]
    %v219 = vld [vmem:[%s3 + $0x8] sm:$0xf]
    %v220 = vld [vmem:[%s3 + $0xc] sm:$0xf]
    %v221 = vld [vmem:[%s3 + $0x10] sm:$0xf]
    %v222 = vld [vmem:[%s3 + $0x14] sm:$0xf]
    %v223 = vld [vmem:[%s3 + $0x18] sm:$0xf]
    %v224 = vld [vmem:[%s3 + $0x1c] sm:$0xf]
    %v225 = vld [vmem:[%s4] sm:$0x1]
    %v227 = vlaneseq
    %v228 = vshrl.u32 %v227, 7
    %v229 = vsub.s32 0, %v228
    %v230 = vrot.slane %v225, %v229
    %v240 = vunpack.c.l.b16 %v217
    %v241 = vunpack.c.l.b16 %v218
    %v242 = vunpack.c.l.b16 %v219
    %v243 = vunpack.c.l.b16 %v220
    %v244 = vunpack.c.l.b16 %v221
    %v245 = vunpack.c.l.b16 %v222
    %v246 = vunpack.c.l.b16 %v223
    %v247 = vunpack.c.l.b16 %v224
    %v248 = vpack.c.b16 %v241, %v240
    %v249 = vpack.c.b16 %v243, %v242
    %v250 = vpack.c.b16 %v245, %v244
    %v251 = vpack.c.b16 %v247, %v246
    %v257 = vsel %vm201, %v216, 0
    %259 = vmatprep.subr.bf16.mxu0 0
    %260 = vmatpush1.bf16.msra.mxu0 0
    %261 = vmatprep.subr.bf16.mxu0 0
    %262 = vmatpush1.bf16.msra.mxu0 0
    %263 = vmatprep.subr.bf16.mxu0 0
    %264 = vmatpush1.bf16.msra.mxu0 0
    %265 = vmatprep.subr.bf16.mxu0 0
    %266 = vmatpush1.bf16.msra.mxu0 0
    %267 = vmatprep.subr.bf16.mxu0 0
    %268 = vmatpush1.bf16.msra.mxu0 %v251
    %269 = vmatprep.subr.bf16.mxu0 0
    %270 = vmatpush1.bf16.msra.mxu0 %v250
    %271 = vmatprep.subr.bf16.mxu0 0
    %272 = vmatpush1.bf16.msra.mxu0 %v249
    %273 = vmatprep.subr.bf16.mxu0 0
    %274 = vmatpush1.bf16.msra.mxu0 %v248
    %275 = vmatprep.subr.bf16.mxu0 0
    %276 = vmatpush2.bf16.msra.mxu0 0
    %277 = vmatprep.subr.bf16.mxu0 0
    %278 = vmatpush2.bf16.msra.mxu0 0
    %279 = vmatprep.subr.bf16.mxu0 0
    %280 = vmatpush2.bf16.msra.mxu0 0
    %281 = vmatprep.subr.bf16.mxu0 0
    %282 = vmatpush2.bf16.msra.mxu0 0
    %283 = vmatprep.subr.bf16.mxu0 0
    %284 = vmatpush2.bf16.msra.mxu0 0
    %285 = vmatprep.subr.bf16.mxu0 0
    %286 = vmatpush2.bf16.msra.mxu0 0
    %287 = vmatprep.subr.bf16.mxu0 0
    %288 = vmatpush2.bf16.msra.mxu0 0
    %289 = vmatprep.subr.bf16.mxu0 0
    %290 = vmatpush2.bf16.msra.mxu0 0
    %291 = vmatprep.mubr.bf16.mxu0 0
    %292 = vmatmul.mubr.bf16.gmra.mxu0 %v257
    %v293 = vpop.f32.mrf.mxu0
    %v294 = vadd.f32 %v230, %v293
    %v295 = vpop.f32.mrf.mxu0
    %v296 = vpop.f32.mrf.mxu0
    %v297 = vpop.f32.mrf.mxu0
    %298 = vdwg.mxu0
    %vm299 = vcmask 130048
    %300 = vst.msk [vmem:[%s5] sm:$0xff] %vm299, %v294
  $region29: #{encoder_forward.1} parent=0 // pred_fallthru
    _
  // Predicated region
  $region30: #{encoder_forward.1} parent=0 // pred_check
    _
  $region31: #{encoder_forward.1} parent=0 // pred_check_branch
    %302 = sbr.rel (0) target = $region33
  $region32: #{encoder_forward.1} parent=0 // pred_region
    _
  $region33: #{encoder_forward.1} parent=0 // pred_fallthru
    _
  // Predicated region
  $region34: #{encoder_forward.1} parent=0 // pred_check
    _
  $region35: #{encoder_forward.1} parent=0 // pred_check_branch
    %304 = sbr.rel (0) target = $region37
  $region36: #{encoder_forward.1} parent=0 // pred_region
    _
  $region37: #{encoder_forward.1} parent=0 // pred_fallthru
    _

</llo_original>
